<compile_context>
chip_gen: v7x
topology: tpu7x:2x2x1
jax: 0.10.0
libtpu: 0.0.40
codegen_flags: <defaults>
</compile_context>

<pallas_src>
import jax
import jax.numpy as jnp
from jax.experimental import pallas as pl
from jax.experimental.pallas import tpu as pltpu


def _pointwise_conv_relu_kernel(x_ref, w_ref, b_ref, o_ref):
    # y[c_out, t] = relu( sum_c W[c_out, c] * x[c, t] + b[c_out] )
    y = jnp.dot(w_ref[...], x_ref[...], preferred_element_type=jnp.float32)
    y = y + b_ref[...]                      # (c_out, 1) broadcast over time tile
    o_ref[...] = jnp.maximum(y, 0.0).astype(o_ref.dtype)


def elementwise1d_stream(x, weight, bias, final: bool = False, *, t_tile: int = 2048):
    """Streaming forward: x [C_in, T] -> y [C_out, T].

    Mirrors Elementwise1dStream.forward: runs the (elementwise) net and
    checks that the time dimension is preserved.
    """
    c_in, t = x.shape
    c_out = weight.shape[0]
    bias2d = bias.reshape(c_out, 1)

    # Tile the time axis.  If T fits in one tile, use a full-extent block
    # (always legal); otherwise use a lane-aligned (multiple-of-128) tile and
    # let Pallas handle the (masked) partial last block.
    if t <= t_tile:
        tile = t
    else:
        tile = max(128, (t_tile // 128) * 128)
    grid = (pl.cdiv(t, tile),)

    dtype_bytes = jnp.dtype(x.dtype).itemsize
    cost = pl.CostEstimate(
        flops=2 * c_out * c_in * t,
        transcendentals=0,
        bytes_accessed=(c_in * t + c_out * t + c_out * c_in + c_out) * dtype_bytes,
    )

    y = pl.pallas_call(
        _pointwise_conv_relu_kernel,
        out_shape=jax.ShapeDtypeStruct((c_out, t), x.dtype),
        grid=grid,
        in_specs=[
            pl.BlockSpec((c_in, tile), lambda i: (0, i)),     # x: streamed over time
            pl.BlockSpec((c_out, c_in), lambda i: (0, 0)),    # W: resident across grid
            pl.BlockSpec((c_out, 1), lambda i: (0, 0)),       # b: resident across grid
        ],
        out_specs=pl.BlockSpec((c_out, tile), lambda i: (0, i)),
        compiler_params=pltpu.CompilerParams(
            dimension_semantics=("parallel",),                # shard T across TCs (v7x)
        ),
        cost_estimate=cost,
    )(x, weight, bias2d)

    # Streaming invariant from Elementwise1dStream.forward
    if y.shape[-1] != x.shape[-1]:
        raise RuntimeError("invalid_elementwise_output")
    return y


if __name__ == "__main__":
    # Small deterministic example consistent with the [C, T] convention.
    # T_TILE=256 with T=512 exercises a 2-step grid (tiled, pipelined path).
    C_IN, C_OUT, T = 4, 8, 512
    key = jax.random.PRNGKey(0)
    kx, kw, kb = jax.random.split(key, 3)

    x = jax.random.normal(kx, (C_IN, T), dtype=jnp.float32)
    # Deterministic "net" parameters (pointwise Conv1d kernel_size=1 + ReLU).
    weight = jax.random.normal(kw, (C_OUT, C_IN), dtype=jnp.float32) * 0.1
    bias = jax.random.normal(kb, (C_OUT,), dtype=jnp.float32) * 0.1

    y = elementwise1d_stream(x, weight, bias, final=False, t_tile=256)
    jax.block_until_ready(y)

    # Sanity check against plain-JAX reference.
    ref = jnp.maximum(weight @ x + bias[:, None], 0.0)
    assert y.shape == (C_OUT, T)
    assert jnp.allclose(y, ref, atol=1e-5), "mismatch vs reference"

    print("KERNEL_OK")
</pallas_src>

<mosaic_0001>
module attributes {stable_mosaic.version = 11 : i64} {
  func.func @_pointwise_conv_relu_kernel(%arg0: i32, %arg1: memref<4x256xf32, #tpu.memory_space<vmem>>, %arg2: memref<8x4xf32, #tpu.memory_space<vmem>>, %arg3: memref<8x1xf32, #tpu.memory_space<vmem>>, %arg4: memref<8x256xf32, #tpu.memory_space<vmem>>) attributes {dimension_semantics = [#tpu.dimension_semantics<parallel>], iteration_bounds = array<i64: 2>, scalar_prefetch = 0 : i64, scratch_operands = 0 : i64, tpu.core_type = #tpu.core_type<tc>, window_params = [{transform_indices = @transform_0, window_bounds = array<i64: 4, 256>}, {pipeline_mode = #tpu.pipeline_mode<synchronous>, transform_indices = @transform_1, window_bounds = array<i64: 8, 4>}, {pipeline_mode = #tpu.pipeline_mode<synchronous>, transform_indices = @transform_2, window_bounds = array<i64: 8, 1>}, {transform_indices = @transform_3, window_bounds = array<i64: 8, 256>}]} {
    %c0 = arith.constant 0 : index
    %c0_0 = arith.constant 0 : index
    %0 = vector.load %arg2[%c0, %c0_0] : memref<8x4xf32, #tpu.memory_space<vmem>>, vector<8x4xf32>
    %c0_1 = arith.constant 0 : index
    %c0_2 = arith.constant 0 : index
    %1 = vector.load %arg1[%c0_1, %c0_2] : memref<4x256xf32, #tpu.memory_space<vmem>>, vector<4x256xf32>
    %cst = arith.constant dense<0.000000e+00> : vector<8x256xf32>
    %2 = tpu.matmul %0, %1, %cst {dimension_numbers = #tpu.dot_dimension_numbers<[1], [0], [0], [1], [0, 0, 1, 1], [], []>} : vector<8x4xf32>, vector<4x256xf32>, vector<8x256xf32> -> vector<8x256xf32>
    %c0_3 = arith.constant 0 : index
    %c0_4 = arith.constant 0 : index
    %3 = vector.load %arg3[%c0_3, %c0_4] : memref<8x1xf32, #tpu.memory_space<vmem>>, vector<8x1xf32>
    %4 = vector.broadcast %3 : vector<8x1xf32> to vector<8x256xf32>
    %5 = arith.addf %2, %4 : vector<8x256xf32>
    %cst_5 = arith.constant 0.000000e+00 : f32
    %6 = vector.broadcast %cst_5 : f32 to vector<8x256xf32>
    %7 = arith.maximumf %5, %6 : vector<8x256xf32>
    %c0_6 = arith.constant 0 : index
    %c0_7 = arith.constant 0 : index
    %8 = vector.load %arg4[%c0_6, %c0_7] : memref<8x256xf32, #tpu.memory_space<vmem>>, vector<8x256xf32>
    tpu.vector_store %arg4[%c0_6, %c0_7], %7 {strides = array<i32>} : memref<8x256xf32, #tpu.memory_space<vmem>>, vector<8x256xf32>,
    return
  }
  func.func @transform_0(%arg0: i32) -> (i32, i32) {
    %c0_i32 = arith.constant 0 : i32
    %c0_i32_0 = arith.constant 0 : i32
    return %c0_i32, %arg0 : i32, i32
  }
  func.func @transform_1(%arg0: i32) -> (i32, i32) {
    %c0_i32 = arith.constant 0 : i32
    %c0_i32_0 = arith.constant 0 : i32
    %c0_i32_1 = arith.constant 0 : i32
    return %c0_i32, %c0_i32_0 : i32, i32
  }
  func.func @transform_2(%arg0: i32) -> (i32, i32) {
    %c0_i32 = arith.constant 0 : i32
    %c0_i32_0 = arith.constant 0 : i32
    %c0_i32_1 = arith.constant 0 : i32
    return %c0_i32, %c0_i32_0 : i32, i32
  }
  func.func @transform_3(%arg0: i32) -> (i32, i32) {
    %c0_i32 = arith.constant 0 : i32
    %c0_i32_0 = arith.constant 0 : i32
    return %c0_i32, %arg0 : i32, i32
  }
}

</mosaic_0001>

<llo_original>
// kernel: tpu_custom_call.1
$region0: #{tpu_custom_call.1}
  #allocation0 [shape = 'u32[]', space=smem, size = 0x4, offset = 0x4, fixed_abs, tag = 'smem constant byte address 0x4 - core index']
  #allocation1 [shape = 'u32[144,128]{1,0:T(1,128)}', space=vmem, size = 0x12000, scoped, tag = 'internal scratch']
  %s0 = inlined_call_operand.vmem [shape: f32[4,512], index: 0, kind: input, shape index: {}]
  %s1 = inlined_call_operand.vmem [shape: f32[8,4], index: 1, kind: input, shape index: {}]
  %s2 = inlined_call_operand.vmem [shape: f32[8,1], index: 2, kind: input, shape index: {}]
  %s3 = inlined_call_operand.hbm [shape: f32[8,512], index: 3, kind: output, shape index: {}]
  %s4 = sld [smem:[#allocation0]]
  $region45: #{tpu_custom_call.1} parent=0
    _
  %s6 = ssub.s32 1, %s4
  %s7 = scalar_select 0, %s6, %s4
  $region1: #{tpu_custom_call.1} parent=0
    #allocation2 [shape = 'u8[16384]{0}', space=vmem, size = 0x4000, scoped, tag = 'output window, operand 0']
    #allocation3 [shape = 's32[2]{0}', space=sflag, size = 0x8, scoped, tag = 'scoped memory for tpu_custom_call.1']
    %8 = vsyncpa [#allocation3], 0
    %s9 = scalar_lea.sflag [#allocation3], 1
    %10 = vsyncpa %s9, 0
    loop: start=0, step=1, limit=4
    $region2: #{tpu_custom_call.1} parent=1 // loop_pre_header
      _
    $region3: #{tpu_custom_call.1} parent=1 // loop_header
      %s12 = sphi 0, %s16
      %p13 = scmp.ge.s32.totalorder %s12, 4
      %s22 = sphi 0, %s24
      %s25 = sphi 0, %s22
      %s26 = sphi 0, %s25
      %s42 = sphi 0, %s26
      %s46 = sphi 0, %s46
      %s48 = sphi 0, %s46
      %s49 = sphi 0, %s48
      %s63 = sphi 0, %s49
      %s67 = sphi 0, %s67
      %s69 = sphi 0, %s67
      %s70 = sphi 0, %s69
      %s84 = sphi 0, %s70
      %s90 = sphi 0, %s92
      %s93 = sphi 0, %s90
      %s94 = sphi 0, %s93
      %s110 = sphi 0, %s94
    $region4: #{tpu_custom_call.1} parent=1 // loop_header_branch
      %15 = sbr.rel (%p13) target = $region8
    $region5: #{tpu_custom_call.1} parent=1 // loop_body
      %s17 = ssub.s32 %s12, 1
      %s18 = ssub.s32 %s12, 2
      %s19 = sadd.s32 %s12, 1
      %s20 = ssub.s32 %s12, %s19
      %p21 = scmp.eq.s32.totalorder %s20, 0
      %s23 = sadd.s32 %s22, 1
      %s24 = scalar_select %p21, %s22, %s23
      %p27 = pneg %p21
      %p28 = scmp.eq.s32.totalorder %s12, 1
      %p29 = por %p27, %p28
      %p30 = scmp.ne.s32.totalorder %s22, %s25
      %p31 = scmp.eq.s32.totalorder %s12, 0
      %p32 = por %p30, %p31
      %p33 = scmp.ne.s32.totalorder %s22, %s25
      %p34 = scmp.eq.s32.totalorder %s17, 1
      %p35 = por %p33, %p34
      %p36 = scmp.ne.s32.totalorder %s25, %s26
      %p37 = scmp.eq.s32.totalorder %s17, 0
      %p38 = por %p36, %p37
      %p39 = scmp.ne.s32.totalorder %s25, %s26
      %p40 = scmp.eq.s32.totalorder %s18, 1
      %p41 = por %p39, %p40
      %p43 = scmp.ne.s32.totalorder %s26, %s42
      %p44 = scmp.eq.s32.totalorder %s18, 0
      %p45 = por %p43, %p44
      %s47 = sadd.s32 %s46, 1
      %p50 = scmp.eq.s32.totalorder %s12, 1
      %p51 = scmp.ne.s32.totalorder %s46, %s48
      %p52 = scmp.eq.s32.totalorder %s12, 0
      %p53 = por %p51, %p52
      %p54 = scmp.ne.s32.totalorder %s46, %s48
      %p55 = scmp.eq.s32.totalorder %s17, 1
      %p56 = por %p54, %p55
      %p57 = scmp.ne.s32.totalorder %s48, %s49
      %p58 = scmp.eq.s32.totalorder %s17, 0
      %p59 = por %p57, %p58
      %p60 = scmp.ne.s32.totalorder %s48, %s49
      %p61 = scmp.eq.s32.totalorder %s18, 1
      %p62 = por %p60, %p61
      %p64 = scmp.ne.s32.totalorder %s49, %s63
      %p65 = scmp.eq.s32.totalorder %s18, 0
      %p66 = por %p64, %p65
      %s68 = sadd.s32 %s67, 1
      %p71 = scmp.eq.s32.totalorder %s12, 1
      %p72 = scmp.ne.s32.totalorder %s67, %s69
      %p73 = scmp.eq.s32.totalorder %s12, 0
      %p74 = por %p72, %p73
      %p75 = scmp.ne.s32.totalorder %s67, %s69
      %p76 = scmp.eq.s32.totalorder %s17, 1
      %p77 = por %p75, %p76
      %p78 = scmp.ne.s32.totalorder %s69, %s70
      %p79 = scmp.eq.s32.totalorder %s17, 0
      %p80 = por %p78, %p79
      %p81 = scmp.ne.s32.totalorder %s69, %s70
      %p82 = scmp.eq.s32.totalorder %s18, 1
      %p83 = por %p81, %p82
      %p85 = scmp.ne.s32.totalorder %s70, %s84
      %p86 = scmp.eq.s32.totalorder %s18, 0
      %p87 = por %p85, %p86
      %s88 = ssub.s32 %s12, %s19
      %p89 = scmp.eq.s32.totalorder %s88, 0
      %s91 = sadd.s32 %s90, 1
      %s92 = scalar_select %p89, %s90, %s91
      %p95 = pneg %p89
      %p96 = scmp.eq.s32.totalorder %s12, 1
      %p97 = por %p95, %p96
      %p98 = scmp.ne.s32.totalorder %s90, %s93
      %p99 = scmp.eq.s32.totalorder %s12, 0
      %p100 = por %p98, %p99
      %p101 = scmp.ne.s32.totalorder %s90, %s93
      %p102 = scmp.eq.s32.totalorder %s17, 1
      %p103 = por %p101, %p102
      %p104 = scmp.ne.s32.totalorder %s93, %s94
      %p105 = scmp.eq.s32.totalorder %s17, 0
      %p106 = por %p104, %p105
      %p107 = scmp.ne.s32.totalorder %s93, %s94
      %p108 = scmp.eq.s32.totalorder %s18, 1
      %p109 = por %p107, %p108
      %p111 = scmp.ne.s32.totalorder %s94, %s110
      %p112 = scmp.eq.s32.totalorder %s18, 0
      %p113 = por %p111, %p112
      %p114 = scmp.le.s32.totalorder 1, %s12
      %p115 = scmp.lt.s32.totalorder %s12, 3
      %p116 = pnand %p114, %p115
      %p117 = pneg %p116
      // Predicated region
      $region9: #{tpu_custom_call.1} parent=5 // pred_check
        _
      $region10: #{tpu_custom_call.1} parent=5 // pred_check_branch
        %119 = sbr.rel (%p116) target = $region12
      $region11: #{tpu_custom_call.1} parent=5 // pred_region
        %s120 = ssub.s32 %s12, 1
        // Predicated region
        $region13: #{tpu_custom_call.1} parent=11 // pred_check
          %p121 = pneg %p59
        $region14: #{tpu_custom_call.1} parent=11 // pred_check_branch
          %123 = sbr.rel (%p121) target = $region16
        $region15: #{tpu_custom_call.1} parent=11 // pred_region
          _
        $region16: #{tpu_custom_call.1} parent=11 // pred_fallthru
          _
        // Predicated region
        $region17: #{tpu_custom_call.1} parent=11 // pred_check
          %p124 = pneg %p80
        $region18: #{tpu_custom_call.1} parent=11 // pred_check_branch
          %126 = sbr.rel (%p124) target = $region20
        $region19: #{tpu_custom_call.1} parent=11 // pred_region
          _
        $region20: #{tpu_custom_call.1} parent=11 // pred_fallthru
          _
      $region12: #{tpu_custom_call.1} parent=5 // pred_fallthru
        _
      %p127 = scmp.lt.s32.totalorder %s12, 2
      // Predicated region
      $region21: #{tpu_custom_call.1} parent=5 // pred_check
        %p128 = pneg %p127
      $region22: #{tpu_custom_call.1} parent=5 // pred_check_branch
        %130 = sbr.rel (%p128) target = $region24
      $region23: #{tpu_custom_call.1} parent=5 // pred_region
        // Predicated region
        $region25: #{tpu_custom_call.1} parent=23 // pred_check
          %p131 = pneg %p32
        $region26: #{tpu_custom_call.1} parent=23 // pred_check_branch
          %133 = sbr.rel (%p131) target = $region28
        $region27: #{tpu_custom_call.1} parent=23 // pred_region
          %s134 = smul.u32 2, %s12
          %p135 = scmp.lt.s32.totalorder %s134, 3
          %s136 = scalar_select %p135, %s134, 3
          %s137 = smul.addr %s136, 4
          %s138 = scalar_lea.vmem %s0, %s137
          %s139 = smul.u32 2, %s12
        $region28: #{tpu_custom_call.1} parent=23 // pred_fallthru
          _
      $region24: #{tpu_custom_call.1} parent=5 // pred_fallthru
        _
      %p140 = scmp.le.s32.totalorder 1, %s12
      %p141 = scmp.lt.s32.totalorder %s12, 3
      %p142 = pnand %p140, %p141
      %p143 = pneg %p142
      // Predicated region
      $region29: #{tpu_custom_call.1} parent=5 // pred_check
        _
      $region30: #{tpu_custom_call.1} parent=5 // pred_check_branch
        %145 = sbr.rel (%p142) target = $region32
      $region31: #{tpu_custom_call.1} parent=5 // pred_region
        %s146 = ssub.s32 %s12, 1
        %s147 = smul.u32 2, %s17
        %p148 = scmp.lt.s32.totalorder %s147, 3
        %s149 = scalar_select %p148, %s147, 3
        %s150 = smul.addr %s149, 4
        %s151 = scalar_lea.vmem %s0, %s150
        %p152 = pneg %p38
        %p153 = pneg %p35
        %p154 = pneg %p59
        %p155 = pneg %p56
        %p156 = pneg %p80
        %p157 = pneg %p77
        %p158 = pneg %p106
        %p159 = pneg %p103
        %s160 = sand.u32 %s93, 1
        %s161 = scalar_lea.sflag [#allocation3], %s160
        %s162 = sand.u32 %s93, 1
        %s163 = smul.addr %s162, 16
        %s164 = scalar_lea.vmem [#allocation2], %s163
        %s165 = smul.u32 2, %s17
        %p166 = scmp.lt.s32.totalorder %s165, 3
        %s167 = scalar_select %p166, %s165, 3
        %s168 = smul.addr %s167, 4
        %s169 = scalar_lea.vmem %s0, %s168
        %s170 = smul.u32 2, %s17
        %s171 = smul.u32 2, %s17
        %v172 = vld [vmem:[%s1] sm:$0xff]
        %v173 = vld [vmem:[%s169] sm:$0xff]
        %v174 = vld [vmem:[%s2] sm:$0xff]
        %176 = vset.pattern.permute.xlu0 0
        %177 = vperm.xlu0 %176, %v174
        %v178 = vpop.permute.xlu0 %177
        %v181 = vcombine.high %v173, %v173
        %vm182 = vcmask 31744
        %v184 = vsel %vm182, %v172, 0
        %vm186 = vcmask 1043456
        %v187 = vsel %vm186, %v173, 0
        %v189 = vsel %vm186, %v181, 0
        %191 = vmatprep.subr.mxu0 %v189
        %192 = vmatpush1.msra.mxu0 %v187
        %193 = vmatprep.subr.mxu0 0.0
        %194 = vmatpush1.msra.mxu0 0.0
        %195 = vmatprep.subr.mxu0 0.0
        %196 = vmatpush1.msra.mxu0 0.0
        %197 = vmatprep.subr.mxu0 0.0
        %198 = vmatpush1.msra.mxu0 0.0
        %199 = vmatprep.subr.mxu0 0.0
        %200 = vmatpush1.msra.mxu0 0.0
        %201 = vmatprep.subr.mxu0 0.0
        %202 = vmatpush1.msra.mxu0 0.0
        %203 = vmatprep.subr.mxu0 0.0
        %204 = vmatpush1.msra.mxu0 0.0
        %205 = vmatprep.subr.mxu0 0.0
        %206 = vmatpush1.msra.mxu0 0.0
        %207 = vmatprep.subr.mxu0 0.0
        %208 = vmatpush1.msra.mxu0 0.0
        %209 = vmatprep.subr.mxu0 0.0
        %210 = vmatpush1.msra.mxu0 0.0
        %211 = vmatprep.subr.mxu0 0.0
        %212 = vmatpush1.msra.mxu0 0.0
        %213 = vmatprep.subr.mxu0 0.0
        %214 = vmatpush1.msra.mxu0 0.0
        %215 = vmatprep.subr.mxu0 0.0
        %216 = vmatpush1.msra.mxu0 0.0
        %217 = vmatprep.subr.mxu0 0.0
        %218 = vmatpush1.msra.mxu0 0.0
        %219 = vmatprep.subr.mxu0 0.0
        %220 = vmatpush1.msra.mxu0 0.0
        %221 = vmatprep.subr.mxu0 0.0
        %222 = vmatpush1.msra.mxu0 0.0
        %223 = vmatprep.subr.mxu0 0.0
        %224 = vmatpush1.msra.mxu0 0.0
        %225 = vmatprep.subr.mxu0 0.0
        %226 = vmatpush1.msra.mxu0 0.0
        %227 = vmatprep.subr.mxu0 0.0
        %228 = vmatpush1.msra.mxu0 0.0
        %229 = vmatprep.subr.mxu0 0.0
        %230 = vmatpush1.msra.mxu0 0.0
        %231 = vmatprep.subr.mxu0 0.0
        %232 = vmatpush1.msra.mxu0 0.0
        %233 = vmatprep.subr.mxu0 0.0
        %234 = vmatpush1.msra.mxu0 0.0
        %235 = vmatprep.subr.mxu0 0.0
        %236 = vmatpush1.msra.mxu0 0.0
        %237 = vmatprep.subr.mxu0 0.0
        %238 = vmatpush1.msra.mxu0 0.0
        %239 = vmatprep.subr.mxu0 0.0
        %240 = vmatpush1.msra.mxu0 0.0
        %241 = vmatprep.subr.mxu0 0.0
        %242 = vmatpush1.msra.mxu0 0.0
        %243 = vmatprep.subr.mxu0 0.0
        %244 = vmatpush1.msra.mxu0 0.0
        %245 = vmatprep.subr.mxu0 0.0
        %246 = vmatpush1.msra.mxu0 0.0
        %247 = vmatprep.subr.mxu0 0.0
        %248 = vmatpush1.msra.mxu0 0.0
        %249 = vmatprep.subr.mxu0 0.0
        %250 = vmatpush1.msra.mxu0 0.0
        %251 = vmatprep.subr.mxu0 0.0
        %252 = vmatpush1.msra.mxu0 0.0
        %253 = vmatprep.subr.mxu0 0.0
        %254 = vmatpush1.msra.mxu0 0.0
        %255 = vmatprep.mubr.f32.mxu0 0.0
        %256 = vmatmul.mubr.f32.gmra.mrb[0].mxu0 %v184
        %v257 = vpop.f32.mrb[0].mxu0
        %v258 = vadd.f32 %v178, %v257
        %v259 = vpop.f32.mrb[0].mxu0
        %v260 = vadd.f32 %v178, %v259
        %261 = vdwg.mxu0
        %v262 = vmax.f32 %v258, 0.0
        %v263 = vmax.f32 %v260, 0.0
        %264 = vst [vmem:[%s164] sm:$0xff] %v262
        %265 = vst [vmem:[%s164 + $0x8] sm:$0xff] %v263
        %s266 = sand.u32 %s93, 1
        %s267 = scalar_lea.sflag [#allocation3], %s266
        %s268 = sand.u32 %s93, 1
        %s269 = smul.addr %s268, 16
        %s270 = scalar_lea.vmem [#allocation2], %s269
        // Predicated region
        $region33: #{tpu_custom_call.1} parent=31 // pred_check
          %p271 = pneg %p103
        $region34: #{tpu_custom_call.1} parent=31 // pred_check_branch
          %273 = sbr.rel (%p271) target = $region36
        $region35: #{tpu_custom_call.1} parent=31 // pred_region
          %s274 = smul.u32 2, %s17
          %s276 = ssub.s32 256, 256
          %277 = vsyncadd %s267, %s276
          %s278 = smul.addr %s274, 128
          %s279 = scalar_lea.hbm %s3, %s278
          %s281 = sshll.u32 %s270, 4
          %s282 = int_to_ptr.vmem [resolvable:$true] %s281
          %284 = dma.vmem_to_hbm [thread:$0]  %s282, 256, %s279, %s267
        $region36: #{tpu_custom_call.1} parent=31 // pred_fallthru
          _
      $region32: #{tpu_custom_call.1} parent=5 // pred_fallthru
        _
      %p285 = scmp.le.s32.totalorder 2, %s12
      // Predicated region
      $region37: #{tpu_custom_call.1} parent=5 // pred_check
        %p286 = pneg %p285
      $region38: #{tpu_custom_call.1} parent=5 // pred_check_branch
        %288 = sbr.rel (%p286) target = $region40
      $region39: #{tpu_custom_call.1} parent=5 // pred_region
        %s289 = ssub.s32 %s12, 2
        // Predicated region
        $region41: #{tpu_custom_call.1} parent=39 // pred_check
          %p290 = pneg %p109
        $region42: #{tpu_custom_call.1} parent=39 // pred_check_branch
          %292 = sbr.rel (%p290) target = $region44
        $region43: #{tpu_custom_call.1} parent=39 // pred_region
          %s293 = sand.u32 %s94, 1
          %s294 = scalar_lea.sflag [#allocation3], %s293
          %s295 = sand.u32 %s94, 1
          %s296 = smul.addr %s295, 16
          %s297 = scalar_lea.vmem [#allocation2], %s296
          %298 = dma.done %s294, 256
        $region44: #{tpu_custom_call.1} parent=39 // pred_fallthru
          _
      $region40: #{tpu_custom_call.1} parent=5 // pred_fallthru
        _
    $region6: #{tpu_custom_call.1} parent=1 // loop_footer
      %s16 = sadd.s32 1, %s12
    $region7: #{tpu_custom_call.1} parent=1 // loop_footer_branch
      %11 = sbr.rel target = $region3
    $region8: #{tpu_custom_call.1} parent=1 // loop_exit
      _
    %299 = vsyncpa [#allocation3], 1
    %s300 = scalar_lea.sflag [#allocation3], 1
    %301 = vsyncpa %s300, 1

</llo_original>
